<compile_context>
chip_gen: v7x
topology: tpu7x:2x2x1
jax: 0.10.0
libtpu: 0.0.40
codegen_flags: <defaults>
</compile_context>

<pallas_src>
import jax
import jax.numpy as jnp
from jax.experimental import pallas as pl
from jax.experimental.pallas import tpu as pltpu


def _scalar_forward_kernel(const_ref, out_ref):
    # Entire forward pass of `Scalar`: emit the parameter value (identity).
    out_ref[0] = const_ref[0]


def scalar_forward_pallas(constant_1d: jax.Array) -> jax.Array:
    """Pallas identity-forward on the (1,) float32 parameter.

    Grid-less, SMEM-in / SMEM-out, no aliasing: a single sld/sst pair. Only
    use this path when a kernel boundary is contractually required; prefer
    returning the parameter directly (or fusing it into a larger kernel).
    """
    return pl.pallas_call(
        _scalar_forward_kernel,
        out_shape=jax.ShapeDtypeStruct((1,), jnp.float32),
        in_specs=[pl.BlockSpec(memory_space=pltpu.SMEM)],
        out_specs=pl.BlockSpec(memory_space=pltpu.SMEM),
    )(constant_1d)


class ScalarPallas:
    """Mirror of the PyTorch Scalar module.

    Default forward (`__call__`) returns a cached 0-d view of the parameter
    with no kernel launch and no per-call ops. `forward_pallas()` is the
    explicit Pallas-kernel path for when a kernel boundary is required.
    """

    def __init__(self, init_value: float):
        # Parameter stored once as a 1-D (1,) float32 array (suggestion 2):
        # minimal SMEM padding, no per-call reshape/astype glue on the kernel
        # path.
        self.constant = jnp.full((1,), init_value, dtype=jnp.float32)
        # Cached 0-d view (suggestion 4): __call__ is a pure attribute read.
        self._constant_0d = self.constant.reshape(())

    def __call__(self) -> jax.Array:
        # Zero-op forward: identity on the parameter (suggestion 1).
        return self._constant_0d

    def forward_pallas(self) -> jax.Array:
        # Kernel-backed forward: SMEM scalar path, no alias (suggestion 3).
        return scalar_forward_pallas(self.constant).reshape(())

    # TODO(synk): when this scalar (e.g. CQL alpha) feeds a larger Pallas loss
    # kernel, pass `self.constant` into that kernel as an SMEM input or via
    # pltpu.PrefetchScalarGridSpec(num_scalar_prefetch=1) and hoist any
    # pl.broadcast_to outside the inner loop, instead of exposing any
    # standalone kernel (suggestion 1 / v7x guidance).


if __name__ == "__main__":
    # The module takes no forward inputs; its only "input" is the init value.
    # Use PRNGKey(0) to pick a deterministic init value for the demo.
    key = jax.random.PRNGKey(0)
    init_value = float(jax.random.uniform(key, (), minval=-1.0, maxval=1.0))

    module = ScalarPallas(init_value)

    # Run the Pallas kernel path once and block on the result.
    out_kernel = jax.block_until_ready(module.forward_pallas())

    # Also exercise the recommended zero-kernel fast path.
    out_direct = jax.block_until_ready(module())

    # Sanity checks: forward returns exactly the parameter value, as 0-d f32.
    assert out_kernel.shape == ()
    assert out_kernel.dtype == jnp.float32
    assert jnp.allclose(out_kernel, jnp.float32(init_value))
    assert out_direct.shape == ()
    assert out_direct.dtype == jnp.float32
    assert jnp.allclose(out_direct, out_kernel)
    # The parameter buffer must be unchanged (no in-place donation surprises).
    assert jnp.allclose(module.constant[0], jnp.float32(init_value))

    print("KERNEL_OK")
</pallas_src>

<mosaic_0001>
module attributes {stable_mosaic.version = 11 : i64} {
  func.func @_scalar_forward_kernel(%arg0: memref<1xf32, #tpu.memory_space<smem>>, %arg1: memref<1xf32, #tpu.memory_space<smem>>) attributes {dimension_semantics = [], scalar_prefetch = 0 : i64, scratch_operands = 0 : i64, tpu.core_type = #tpu.core_type<tc>} {
    %c0 = arith.constant 0 : index
    %0 = memref.load %arg0[%c0] : memref<1xf32, #tpu.memory_space<smem>>
    %c0_0 = arith.constant 0 : index
    %1 = memref.load %arg1[%c0_0] : memref<1xf32, #tpu.memory_space<smem>>
    memref.store %0, %arg1[%c0_0] : memref<1xf32, #tpu.memory_space<smem>>
    return
  }
}

</mosaic_0001>

<llo_original>
// kernel: tpu_custom_call.1
$region0: #{tpu_custom_call.1}
  #allocation0 [shape = 'u32[]', space=smem, size = 0x4, offset = 0x4, fixed_abs, tag = 'smem constant byte address 0x4 - core index']
  #allocation1 [shape = 'u32[144,128]{1,0:T(1,128)}', space=vmem, size = 0x12000, scoped, tag = 'internal scratch']
  #allocation2 [shape = 'f32[1]{0:T(128)S(6)}', space=smem, size = 0x200, scoped, tag = 'scoped memory for tpu_custom_call.1']
  %s0 = inlined_call_operand.<no memory space> [shape: f32[1], index: 0, kind: input, shape index: {}]
  %s1 = inlined_call_operand.hbm [shape: f32[1], index: 1, kind: output, shape index: {}]
  %s2 = sld [smem:[#allocation0]]
  $region14: #{tpu_custom_call.1} parent=0
    _
  %s4 = ssub.s32 1, %s2
  %s5 = scalar_select 0, %s4, %s2
  %6 = sst [smem:[#allocation2]] %s0
  $region1: #{tpu_custom_call.1} parent=0
    #allocation3 [shape = 'u8[512]{0}', space=smem, size = 0x200, scoped, tag = 'output window, operand 0, single buffered']
    #allocation4 [shape = 's32[1]{0}', space=sflag, size = 0x4, scoped, tag = 'scoped memory for tpu_custom_call.1']
    %7 = vsyncpa [#allocation4], 0
    // Predicated region
    $region2: #{tpu_custom_call.1} parent=1 // pred_check
      _
    $region3: #{tpu_custom_call.1} parent=1 // pred_check_branch
      %9 = sbr.rel (0) target = $region5
    $region4: #{tpu_custom_call.1} parent=1 // pred_region
      _
    $region5: #{tpu_custom_call.1} parent=1 // pred_fallthru
      _
    %s10 = sld [smem:[#allocation2]]
    %s11 = scalar_lea.smem [#allocation3], 0
    %12 = sst [smem:[%s11]] %s10
    // Predicated region
    $region6: #{tpu_custom_call.1} parent=1 // pred_check
      _
    $region7: #{tpu_custom_call.1} parent=1 // pred_check_branch
      %14 = sbr.rel (0) target = $region9
    $region8: #{tpu_custom_call.1} parent=1 // pred_region
      %s16 = ssub.s32 16, 16
      %17 = vsyncadd [#allocation4], %s16
      %20 = dma.smem_to_hbm [#allocation3], 16, %s1, [#allocation4]
    $region9: #{tpu_custom_call.1} parent=1 // pred_fallthru
      _
    // Predicated region
    $region10: #{tpu_custom_call.1} parent=1 // pred_check
      _
    $region11: #{tpu_custom_call.1} parent=1 // pred_check_branch
      %22 = sbr.rel (0) target = $region13
    $region12: #{tpu_custom_call.1} parent=1 // pred_region
      %23 = dma.done [#allocation4], 16
    $region13: #{tpu_custom_call.1} parent=1 // pred_fallthru
      _
    %24 = sfence
    %25 = vsyncpa [#allocation4], 1

</llo_original>
